<compile_context>
chip_gen: v5e
topology: v5e:2x2
jax: 0.10.0
libtpu: 0.0.40
codegen_flags: <defaults>
</compile_context>

<pallas_src>
from functools import partial

import jax
import jax.numpy as jnp
from jax.experimental import pallas as pl
from jax.experimental.pallas import tpu as pltpu

_EPS = 1e-8


def _fused_ce_kernel(pf_ref, fg_ref, fw_ref,
                     pi_ref, iv_ref, iw_ref,
                     pm_ref, mk_ref, mw_ref,
                     out_ref, acc_ref,
                     *, c, tile, valid_cols, need_mask, term_weights):
    """acc += sum_terms  label * log(pred + eps) * weight   (tail-masked).

    pred/label refs: (C*f, TILE); weight refs: (f, TILE); out_ref: (1, 128);
    acc_ref: (C*f, TILE) f32 VMEM scratch, resident across the tile axis.
    """
    ck = pl.program_id(1)           # chunk (v7x megacore split of tile axis)
    t = pl.program_id(2)            # tile within chunk (reduction axis)

    @pl.when(t == 0)
    def _():
        acc_ref[...] = jnp.zeros_like(acc_ref)

    def term(p_ref, l_ref, w_ref, lw):
        p = p_ref[...].astype(jnp.float32)          # (C*f, T)
        l = l_ref[...].astype(jnp.float32)          # (C*f, T)
        w = w_ref[...].astype(jnp.float32)          # (f,   T)
        w = jnp.tile(w, (c, 1))                     # (C*f, T) sublane copy (XLU)
        r = l * jnp.log(p + _EPS) * w
        if lw != 1.0:                               # fold per-term loss weight
            r = r * lw
        return r

    contrib = (term(pf_ref, fg_ref, fw_ref, term_weights[0])
               + term(pi_ref, iv_ref, iw_ref, term_weights[1])
               + term(pm_ref, mk_ref, mw_ref, term_weights[2]))

    if need_mask:
        # Ragged tail of the (folded) spatial axis: zero lanes past the true
        # extent.  The where() also discards any NaN/Inf produced by log() on
        # the unspecified out-of-bounds contents of the boundary block.
        col0 = (ck * pl.num_programs(2) + t) * tile
        lane = jax.lax.broadcasted_iota(jnp.int32, (1, tile), 1)
        contrib = jnp.where(col0 + lane < valid_cols, contrib, 0.0)

    acc_ref[...] += contrib

    @pl.when(t == pl.num_programs(2) - 1)
    def _():
        # Final reduce lands on the otherwise idle XLU slot; write only a tiny
        # lane-broadcast (1,128) per (batch, chunk) instead of (C,TILE) blocks.
        s = jnp.sum(acc_ref[...], axis=0, keepdims=True)    # (1, T)
        s = jnp.sum(s, axis=1, keepdims=True)               # (1, 1)
        out_ref[...] = jnp.broadcast_to(s, out_ref.shape)   # (1, 128)


def _fold_factor(c, hw):
    """Fold 8//C of H*W into the sublane axis when it divides cleanly."""
    if c <= 8 and 8 % c == 0 and hw % (8 // c) == 0:
        return 8 // c
    return 1


def _choose_tile(s, max_tile):
    if s <= max_tile:
        return s, 1                      # full-extent block, no 128 constraint
    tile = (max_tile // 128) * 128       # lane-axis tile, multiple of 128
    return tile, pl.cdiv(s, tile)


def _choose_chunks(n_batch, n_tiles):
    """v7x megacore: give the 2nd TensorCore work when N alone cannot."""
    if n_batch >= 2 or n_tiles < 2 or n_tiles % 2 != 0:
        return 1
    return 2


def _fused_total_sum(pf, fg, fw, pi, iv, iw, pm, mk, mw, *,
                     term_weights=(1.0, 1.0, 1.0), max_tile=8192):
    """One pallas_call returning  sum over everything of  lab*log(pred+eps)*w."""
    n, c, h, w_dim = pf.shape
    hw = h * w_dim
    f = _fold_factor(c, hw)
    sub = c * f
    s = hw // f                                     # folded spatial extent
    tile, n_tiles = _choose_tile(s, max_tile)
    n_chunks = _choose_chunks(n, n_tiles)
    tpc = n_tiles // n_chunks                       # tiles per chunk
    need_mask = (n_tiles * tile != s)

    def fold_pl(x):   # (N,C,H,W) -> (N, C*f, HW/f)   free row-major reshape
        return x.reshape(n, sub, s)

    def fold_w(x):    # (N,H,W)   -> (N, f, HW/f)     free row-major reshape
        return x.reshape(n, f, s)

    args = (fold_pl(pf), fold_pl(fg), fold_w(fw),
            fold_pl(pi), fold_pl(iv), fold_w(iw),
            fold_pl(pm), fold_pl(mk), fold_w(mw))

    def data_idx(i, ck, t):
        return (i, 0, ck * tpc + t)

    pred_spec = pl.BlockSpec((None, sub, tile), data_idx)
    wght_spec = pl.BlockSpec((None, f, tile), data_idx)
    out_spec = pl.BlockSpec((None, 1, 128), lambda i, ck, t: (i, ck, 0))

    kernel = partial(_fused_ce_kernel, c=c, tile=tile, valid_cols=s,
                     need_mask=need_mask, term_weights=tuple(term_weights))

    elems = 3 * n * c * hw
    bytes_accessed = (sum(int(a.size) * a.dtype.itemsize for a in args)
                      + n * n_chunks * 128 * 4)
    cost = pl.CostEstimate(flops=4 * elems, transcendentals=elems,
                           bytes_accessed=bytes_accessed)

    out = pl.pallas_call(
        kernel,
        out_shape=jax.ShapeDtypeStruct((n, n_chunks, 128), jnp.float32),
        grid_spec=pltpu.PrefetchScalarGridSpec(
            num_scalar_prefetch=0,
            grid=(n, n_chunks, tpc),
            in_specs=[pred_spec, pred_spec, wght_spec] * 3,
            out_specs=out_spec,
            scratch_shapes=[pltpu.VMEM((sub, tile), jnp.float32)],
        ),
        compiler_params=pltpu.CompilerParams(
            dimension_semantics=("parallel", "parallel", "arbitrary")),
        cost_estimate=cost,
    )(*args)

    # The per-(batch, chunk) scalar was lane-broadcast; pick lane 0 and finish
    # with a tiny O(N * n_chunks) reduction in plain JAX.
    return jnp.sum(out[:, :, 0])


@partial(jax.jit, static_argnames=("max_tile",))
def cross_loss_pallas(pf, pi, pm, fg, fw, iv, iw, mk, mw, *, max_tile=8192):
    """Pallas implementation of cross_loss.forward (weights = [1, 1, 1])."""
    weights = (1.0, 1.0, 1.0)
    n, _, h, w = pf.shape
    denom = jnp.float32(n * h * w)
    total = _fused_total_sum(pf, fg, fw, pi, iv, iw, pm, mk, mw,
                             term_weights=weights, max_tile=max_tile)
    return -total / denom


def cross_loss_reference(pf, pi, pm, fg, fw, iv, iw, mk, mw):
    """Pure-JAX reference mirroring the PyTorch forward exactly."""
    def term(pred, lab, wt):
        return -jnp.mean(jnp.sum(lab * jnp.log(pred + 1e-8), axis=1) * wt)
    return term(pf, fg, fw) + term(pi, iv, iw) + term(pm, mk, mw)


if __name__ == "__main__":
    key = jax.random.PRNGKey(0)

    def make_inputs(k, n, c, h, w):
        ks = jax.random.split(k, 9)

        def make_pred(kk):
            logits = jax.random.normal(kk, (n, c, h, w), dtype=jnp.float32)
            return jax.nn.softmax(logits, axis=1)

        def make_label(kk):
            idx = jax.random.randint(kk, (n, h, w), 0, c)
            return jnp.transpose(jax.nn.one_hot(idx, c, dtype=jnp.float32),
                                 (0, 3, 1, 2))

        def make_weight(kk):
            return jax.random.uniform(kk, (n, h, w), dtype=jnp.float32,
                                      minval=0.5, maxval=1.5)

        pf, pi, pm = make_pred(ks[0]), make_pred(ks[1]), make_pred(ks[2])
        fg, iv, mk = make_label(ks[3]), make_label(ks[4]), make_label(ks[5])
        fw, iw, mw = make_weight(ks[6]), make_weight(ks[7]), make_weight(ks[8])
        return pf, pi, pm, fg, fw, iv, iw, mk, mw

    # 1) Base shape (N=2, C=4, 16x16): sublane fold f=2, single full-extent tile.
    args = make_inputs(key, 2, 4, 16, 16)
    out = cross_loss_pallas(*args)
    jax.block_until_ready(out)
    ref = cross_loss_reference(*args)
    assert jnp.allclose(out, ref, rtol=1e-5, atol=1e-5), (out, ref)

    # 2) N=1, ragged spatial extent, small tile: exercises the in-kernel tail
    #    mask and the parallel chunk split (feeds v7x's second TensorCore).
    args2 = make_inputs(jax.random.fold_in(key, 1), 1, 4, 20, 24)
    out2 = cross_loss_pallas(*args2, max_tile=128)
    jax.block_until_ready(out2)
    ref2 = cross_loss_reference(*args2)
    assert jnp.allclose(out2, ref2, rtol=1e-5, atol=1e-5), (out2, ref2)

    # 3) C=3 (no sublane fold), multi-tile accumulation with a ragged tail.
    args3 = make_inputs(jax.random.fold_in(key, 2), 2, 3, 18, 20)
    out3 = cross_loss_pallas(*args3, max_tile=128)
    jax.block_until_ready(out3)
    ref3 = cross_loss_reference(*args3)
    assert jnp.allclose(out3, ref3, rtol=1e-5, atol=1e-5), (out3, ref3)

    print("KERNEL_OK")
</pallas_src>

<mosaic_0001>
module attributes {stable_mosaic.version = 11 : i64} {
  func.func @_fused_ce_kernel(%arg0: i32, %arg1: i32, %arg2: i32, %arg3: memref<1x8x128xf32, #tpu.memory_space<vmem>>, %arg4: memref<1x8x128xf32, #tpu.memory_space<vmem>>, %arg5: memref<1x2x128xf32, #tpu.memory_space<vmem>>, %arg6: memref<1x8x128xf32, #tpu.memory_space<vmem>>, %arg7: memref<1x8x128xf32, #tpu.memory_space<vmem>>, %arg8: memref<1x2x128xf32, #tpu.memory_space<vmem>>, %arg9: memref<1x8x128xf32, #tpu.memory_space<vmem>>, %arg10: memref<1x8x128xf32, #tpu.memory_space<vmem>>, %arg11: memref<1x2x128xf32, #tpu.memory_space<vmem>>, %arg12: memref<1x1x128xf32, #tpu.memory_space<vmem>>, %arg13: memref<8x128xf32, #tpu.memory_space<vmem>>) attributes {dimension_semantics = [#tpu.dimension_semantics<parallel>, #tpu.dimension_semantics<parallel>, #tpu.dimension_semantics<arbitrary>], iteration_bounds = array<i64: 2, 1, 1>, scalar_prefetch = 0 : i64, scratch_operands = 1 : i64, tpu.core_type = #tpu.core_type<tc>, window_params = [{transform_indices = @transform_0, window_bounds = array<i64: 1, 8, 128>}, {transform_indices = @transform_1, window_bounds = array<i64: 1, 8, 128>}, {transform_indices = @transform_2, window_bounds = array<i64: 1, 2, 128>}, {transform_indices = @transform_3, window_bounds = array<i64: 1, 8, 128>}, {transform_indices = @transform_4, window_bounds = array<i64: 1, 8, 128>}, {transform_indices = @transform_5, window_bounds = array<i64: 1, 2, 128>}, {transform_indices = @transform_6, window_bounds = array<i64: 1, 8, 128>}, {transform_indices = @transform_7, window_bounds = array<i64: 1, 8, 128>}, {transform_indices = @transform_8, window_bounds = array<i64: 1, 2, 128>}, {transform_indices = @transform_9, window_bounds = array<i64: 1, 1, 128>}]} {
    %c0_i32 = arith.constant 0 : i32
    %0 = arith.cmpi eq, %arg2, %c0_i32 : i32
    %1 = arith.extui %0 : i1 to i32
    %c0_i32_0 = arith.constant 0 : i32
    %2 = arith.cmpi ne, %1, %c0_i32_0 : i32
    scf.if %2 {
      %cst_35 = arith.constant 0.000000e+00 : f32
      %47 = vector.broadcast %cst_35 : f32 to vector<8x128xf32>
      %c0_36 = arith.constant 0 : index
      %c0_37 = arith.constant 0 : index
      %48 = vector.load %arg13[%c0_36, %c0_37] : memref<8x128xf32, #tpu.memory_space<vmem>>, vector<8x128xf32>
      tpu.vector_store %arg13[%c0_36, %c0_37], %47 {strides = array<i32>} : memref<8x128xf32, #tpu.memory_space<vmem>>, vector<8x128xf32>,
    } else {
    }
    %c0 = arith.constant 0 : index
    %c0_1 = arith.constant 0 : index
    %c0_2 = arith.constant 0 : index
    %3 = vector.load %arg3[%c0, %c0_1, %c0_2] : memref<1x8x128xf32, #tpu.memory_space<vmem>>, vector<1x8x128xf32>
    %4 = vector.shape_cast %3 : vector<1x8x128xf32> to vector<8x128xf32>
    %c0_3 = arith.constant 0 : index
    %c0_4 = arith.constant 0 : index
    %c0_5 = arith.constant 0 : index
    %5 = vector.load %arg4[%c0_3, %c0_4, %c0_5] : memref<1x8x128xf32, #tpu.memory_space<vmem>>, vector<1x8x128xf32>
    %6 = vector.shape_cast %5 : vector<1x8x128xf32> to vector<8x128xf32>
    %c0_6 = arith.constant 0 : index
    %c0_7 = arith.constant 0 : index
    %c0_8 = arith.constant 0 : index
    %7 = vector.load %arg5[%c0_6, %c0_7, %c0_8] : memref<1x2x128xf32, #tpu.memory_space<vmem>>, vector<1x2x128xf32>
    %8 = vector.shape_cast %7 : vector<1x2x128xf32> to vector<2x128xf32>
    %9 = tpu.concatenate %8, %8, %8, %8 in 0 : vector<2x128xf32>, vector<2x128xf32>, vector<2x128xf32>, vector<2x128xf32> -> vector<8x128xf32>
    %cst = arith.constant 9.99999993E-9 : f32
    %10 = vector.broadcast %cst : f32 to vector<8x128xf32>
    %11 = arith.addf %4, %10 : vector<8x128xf32>
    %12 = math.log %11 : vector<8x128xf32>
    %13 = arith.mulf %6, %12 : vector<8x128xf32>
    %14 = arith.mulf %13, %9 : vector<8x128xf32>
    %c0_9 = arith.constant 0 : index
    %c0_10 = arith.constant 0 : index
    %c0_11 = arith.constant 0 : index
    %15 = vector.load %arg6[%c0_9, %c0_10, %c0_11] : memref<1x8x128xf32, #tpu.memory_space<vmem>>, vector<1x8x128xf32>
    %16 = vector.shape_cast %15 : vector<1x8x128xf32> to vector<8x128xf32>
    %c0_12 = arith.constant 0 : index
    %c0_13 = arith.constant 0 : index
    %c0_14 = arith.constant 0 : index
    %17 = vector.load %arg7[%c0_12, %c0_13, %c0_14] : memref<1x8x128xf32, #tpu.memory_space<vmem>>, vector<1x8x128xf32>
    %18 = vector.shape_cast %17 : vector<1x8x128xf32> to vector<8x128xf32>
    %c0_15 = arith.constant 0 : index
    %c0_16 = arith.constant 0 : index
    %c0_17 = arith.constant 0 : index
    %19 = vector.load %arg8[%c0_15, %c0_16, %c0_17] : memref<1x2x128xf32, #tpu.memory_space<vmem>>, vector<1x2x128xf32>
    %20 = vector.shape_cast %19 : vector<1x2x128xf32> to vector<2x128xf32>
    %21 = tpu.concatenate %20, %20, %20, %20 in 0 : vector<2x128xf32>, vector<2x128xf32>, vector<2x128xf32>, vector<2x128xf32> -> vector<8x128xf32>
    %cst_18 = arith.constant 9.99999993E-9 : f32
    %22 = vector.broadcast %cst_18 : f32 to vector<8x128xf32>
    %23 = arith.addf %16, %22 : vector<8x128xf32>
    %24 = math.log %23 : vector<8x128xf32>
    %25 = arith.mulf %18, %24 : vector<8x128xf32>
    %26 = arith.mulf %25, %21 : vector<8x128xf32>
    %27 = arith.addf %14, %26 : vector<8x128xf32>
    %c0_19 = arith.constant 0 : index
    %c0_20 = arith.constant 0 : index
    %c0_21 = arith.constant 0 : index
    %28 = vector.load %arg9[%c0_19, %c0_20, %c0_21] : memref<1x8x128xf32, #tpu.memory_space<vmem>>, vector<1x8x128xf32>
    %29 = vector.shape_cast %28 : vector<1x8x128xf32> to vector<8x128xf32>
    %c0_22 = arith.constant 0 : index
    %c0_23 = arith.constant 0 : index
    %c0_24 = arith.constant 0 : index
    %30 = vector.load %arg10[%c0_22, %c0_23, %c0_24] : memref<1x8x128xf32, #tpu.memory_space<vmem>>, vector<1x8x128xf32>
    %31 = vector.shape_cast %30 : vector<1x8x128xf32> to vector<8x128xf32>
    %c0_25 = arith.constant 0 : index
    %c0_26 = arith.constant 0 : index
    %c0_27 = arith.constant 0 : index
    %32 = vector.load %arg11[%c0_25, %c0_26, %c0_27] : memref<1x2x128xf32, #tpu.memory_space<vmem>>, vector<1x2x128xf32>
    %33 = vector.shape_cast %32 : vector<1x2x128xf32> to vector<2x128xf32>
    %34 = tpu.concatenate %33, %33, %33, %33 in 0 : vector<2x128xf32>, vector<2x128xf32>, vector<2x128xf32>, vector<2x128xf32> -> vector<8x128xf32>
    %cst_28 = arith.constant 9.99999993E-9 : f32
    %35 = vector.broadcast %cst_28 : f32 to vector<8x128xf32>
    %36 = arith.addf %29, %35 : vector<8x128xf32>
    %37 = math.log %36 : vector<8x128xf32>
    %38 = arith.mulf %31, %37 : vector<8x128xf32>
    %39 = arith.mulf %38, %34 : vector<8x128xf32>
    %40 = arith.addf %27, %39 : vector<8x128xf32>
    %c0_29 = arith.constant 0 : index
    %c0_30 = arith.constant 0 : index
    %41 = vector.load %arg13[%c0_29, %c0_30] : memref<8x128xf32, #tpu.memory_space<vmem>>, vector<8x128xf32>
    %42 = arith.addf %41, %40 : vector<8x128xf32>
    %c0_31 = arith.constant 0 : index
    %c0_32 = arith.constant 0 : index
    %43 = vector.load %arg13[%c0_31, %c0_32] : memref<8x128xf32, #tpu.memory_space<vmem>>, vector<8x128xf32>
    tpu.vector_store %arg13[%c0_31, %c0_32], %42 {strides = array<i32>} : memref<8x128xf32, #tpu.memory_space<vmem>>, vector<8x128xf32>,
    %c0_i32_33 = arith.constant 0 : i32
    %44 = arith.cmpi eq, %arg2, %c0_i32_33 : i32
    %45 = arith.extui %44 : i1 to i32
    %c0_i32_34 = arith.constant 0 : i32
    %46 = arith.cmpi ne, %45, %c0_i32_34 : i32
    scf.if %46 {
      %c0_35 = arith.constant 0 : index
      %c0_36 = arith.constant 0 : index
      %47 = vector.load %arg13[%c0_35, %c0_36] : memref<8x128xf32, #tpu.memory_space<vmem>>, vector<8x128xf32>
      %cst_37 = arith.constant dense<0.000000e+00> : vector<128xf32>
      %48 = vector.multi_reduction <add>, %47, %cst_37 [0] : vector<8x128xf32> to vector<128xf32>
      %49 = vector.shape_cast %48 : vector<128xf32> to vector<1x128xf32>
      %cst_38 = arith.constant dense<0.000000e+00> : vector<1xf32>
      %50 = vector.multi_reduction <add>, %49, %cst_38 [1] : vector<1x128xf32> to vector<1xf32>
      %51 = vector.shape_cast %50 : vector<1xf32> to vector<1x1xf32>
      %52 = vector.shape_cast %51 : vector<1x1xf32> to vector<1x1xf32>
      %53 = vector.broadcast %52 : vector<1x1xf32> to vector<1x128xf32>
      %c0_39 = arith.constant 0 : index
      %c0_40 = arith.constant 0 : index
      %c0_41 = arith.constant 0 : index
      %54 = vector.load %arg12[%c0_39, %c0_40, %c0_41] : memref<1x1x128xf32, #tpu.memory_space<vmem>>, vector<1x1x128xf32>
      %55 = vector.shape_cast %54 : vector<1x1x128xf32> to vector<1x128xf32>
      %56 = vector.shape_cast %53 : vector<1x128xf32> to vector<1x1x128xf32>
      tpu.vector_store %arg12[%c0_39, %c0_40, %c0_41], %56 {strides = array<i32>} : memref<1x1x128xf32, #tpu.memory_space<vmem>>, vector<1x1x128xf32>,
    } else {
    }
    return
  }
  func.func @transform_0(%arg0: i32, %arg1: i32, %arg2: i32) -> (i32, i32, i32) {
    %c1_i32 = arith.constant 1 : i32
    %0 = arith.muli %arg1, %c1_i32 : i32
    %1 = arith.addi %0, %arg2 : i32
    %c0_i32 = arith.constant 0 : i32
    %c0_i32_0 = arith.constant 0 : i32
    return %arg0, %c0_i32, %1 : i32, i32, i32
  }
  func.func @transform_1(%arg0: i32, %arg1: i32, %arg2: i32) -> (i32, i32, i32) {
    %c1_i32 = arith.constant 1 : i32
    %0 = arith.muli %arg1, %c1_i32 : i32
    %1 = arith.addi %0, %arg2 : i32
    %c0_i32 = arith.constant 0 : i32
    %c0_i32_0 = arith.constant 0 : i32
    return %arg0, %c0_i32, %1 : i32, i32, i32
  }
  func.func @transform_2(%arg0: i32, %arg1: i32, %arg2: i32) -> (i32, i32, i32) {
    %c1_i32 = arith.constant 1 : i32
    %0 = arith.muli %arg1, %c1_i32 : i32
    %1 = arith.addi %0, %arg2 : i32
    %c0_i32 = arith.constant 0 : i32
    %c0_i32_0 = arith.constant 0 : i32
    return %arg0, %c0_i32, %1 : i32, i32, i32
  }
  func.func @transform_3(%arg0: i32, %arg1: i32, %arg2: i32) -> (i32, i32, i32) {
    %c1_i32 = arith.constant 1 : i32
    %0 = arith.muli %arg1, %c1_i32 : i32
    %1 = arith.addi %0, %arg2 : i32
    %c0_i32 = arith.constant 0 : i32
    %c0_i32_0 = arith.constant 0 : i32
    return %arg0, %c0_i32, %1 : i32, i32, i32
  }
  func.func @transform_4(%arg0: i32, %arg1: i32, %arg2: i32) -> (i32, i32, i32) {
    %c1_i32 = arith.constant 1 : i32
    %0 = arith.muli %arg1, %c1_i32 : i32
    %1 = arith.addi %0, %arg2 : i32
    %c0_i32 = arith.constant 0 : i32
    %c0_i32_0 = arith.constant 0 : i32
    return %arg0, %c0_i32, %1 : i32, i32, i32
  }
  func.func @transform_5(%arg0: i32, %arg1: i32, %arg2: i32) -> (i32, i32, i32) {
    %c1_i32 = arith.constant 1 : i32
    %0 = arith.muli %arg1, %c1_i32 : i32
    %1 = arith.addi %0, %arg2 : i32
    %c0_i32 = arith.constant 0 : i32
    %c0_i32_0 = arith.constant 0 : i32
    return %arg0, %c0_i32, %1 : i32, i32, i32
  }
  func.func @transform_6(%arg0: i32, %arg1: i32, %arg2: i32) -> (i32, i32, i32) {
    %c1_i32 = arith.constant 1 : i32
    %0 = arith.muli %arg1, %c1_i32 : i32
    %1 = arith.addi %0, %arg2 : i32
    %c0_i32 = arith.constant 0 : i32
    %c0_i32_0 = arith.constant 0 : i32
    return %arg0, %c0_i32, %1 : i32, i32, i32
  }
  func.func @transform_7(%arg0: i32, %arg1: i32, %arg2: i32) -> (i32, i32, i32) {
    %c1_i32 = arith.constant 1 : i32
    %0 = arith.muli %arg1, %c1_i32 : i32
    %1 = arith.addi %0, %arg2 : i32
    %c0_i32 = arith.constant 0 : i32
    %c0_i32_0 = arith.constant 0 : i32
    return %arg0, %c0_i32, %1 : i32, i32, i32
  }
  func.func @transform_8(%arg0: i32, %arg1: i32, %arg2: i32) -> (i32, i32, i32) {
    %c1_i32 = arith.constant 1 : i32
    %0 = arith.muli %arg1, %c1_i32 : i32
    %1 = arith.addi %0, %arg2 : i32
    %c0_i32 = arith.constant 0 : i32
    %c0_i32_0 = arith.constant 0 : i32
    return %arg0, %c0_i32, %1 : i32, i32, i32
  }
  func.func @transform_9(%arg0: i32, %arg1: i32, %arg2: i32) -> (i32, i32, i32) {
    %c0_i32 = arith.constant 0 : i32
    %c0_i32_0 = arith.constant 0 : i32
    return %arg0, %arg1, %c0_i32 : i32, i32, i32
  }
}

</mosaic_0001>

<llo_original>
// kernel: cross_loss_pallas.1
$region0: #{cross_loss_pallas.1}
  #allocation0 [shape = 'u32[]', space=smem, size = 0x4, offset = 0x4, fixed_abs, tag = 'smem constant byte address 0x4 - core index']
  #allocation1 [shape = 'u32[72,128]{1,0:T(1,128)}', space=vmem, size = 0x9000, scoped, tag = 'internal scratch']
  #allocation2 [shape = 'f32[8,128]{1,0:T(8,128)}', space=vmem, size = 0x1000, scoped, tag = 'scratch operand']
  %s0 = inlined_call_operand.vmem [shape: f32[2,8,128], index: 0, kind: input, shape index: {}]
  %s1 = inlined_call_operand.vmem [shape: f32[2,8,128], index: 1, kind: input, shape index: {}]
  %s2 = inlined_call_operand.vmem [shape: f32[2,2,128], index: 2, kind: input, shape index: {}]
  %s3 = inlined_call_operand.vmem [shape: f32[2,8,128], index: 3, kind: input, shape index: {}]
  %s4 = inlined_call_operand.vmem [shape: f32[2,8,128], index: 4, kind: input, shape index: {}]
  %s5 = inlined_call_operand.vmem [shape: f32[2,2,128], index: 5, kind: input, shape index: {}]
  %s6 = inlined_call_operand.vmem [shape: f32[2,8,128], index: 6, kind: input, shape index: {}]
  %s7 = inlined_call_operand.vmem [shape: f32[2,8,128], index: 7, kind: input, shape index: {}]
  %s8 = inlined_call_operand.vmem [shape: f32[2,2,128], index: 8, kind: input, shape index: {}]
  %s9 = inlined_call_operand.vmem [shape: f32[2,1,128], index: 9, kind: output, shape index: {}]
  %s10 = sld [smem:[#allocation0]]
  $region77: #{cross_loss_pallas.1} parent=0
    _
  %s12 = ssub.s32 1, %s10
  %s13 = scalar_select 0, %s12, %s10
  loop: start=0, step=1, limit=4
  $region2: #{cross_loss_pallas.1} parent=0 // loop_pre_header
    _
  $region3: #{cross_loss_pallas.1} parent=0 // loop_header
    %s15 = sphi 0, %s19
    %p16 = scmp.ge.s32.totalorder %s15, 4
    %s22 = sphi 0, %s41
    %s23 = sphi 0, %s37
    %s24 = sphi 0, %s33
    %s25 = sphi 0, %s22
    %s26 = sphi 0, %s23
    %s27 = sphi 0, %s24
    %s28 = sphi 0, %s25
    %s29 = sphi 0, %s26
    %s30 = sphi 0, %s27
    %s48 = sphi 0, %s50
    %s51 = sphi 0, %s48
    %s52 = sphi 0, %s51
    %s68 = sphi 0, %s52
    %s78 = sphi 0, %s80
    %s81 = sphi 0, %s78
    %s82 = sphi 0, %s81
    %s98 = sphi 0, %s82
    %s108 = sphi 0, %s110
    %s111 = sphi 0, %s108
    %s112 = sphi 0, %s111
    %s128 = sphi 0, %s112
    %s138 = sphi 0, %s140
    %s141 = sphi 0, %s138
    %s142 = sphi 0, %s141
    %s158 = sphi 0, %s142
    %s168 = sphi 0, %s170
    %s171 = sphi 0, %s168
    %s172 = sphi 0, %s171
    %s188 = sphi 0, %s172
    %s198 = sphi 0, %s200
    %s201 = sphi 0, %s198
    %s202 = sphi 0, %s201
    %s218 = sphi 0, %s202
    %s228 = sphi 0, %s230
    %s231 = sphi 0, %s228
    %s232 = sphi 0, %s231
    %s248 = sphi 0, %s232
    %s258 = sphi 0, %s260
    %s261 = sphi 0, %s258
    %s262 = sphi 0, %s261
    %s278 = sphi 0, %s262
    %s288 = sphi 0, %s290
    %s291 = sphi 0, %s288
    %s292 = sphi 0, %s291
    %s308 = sphi 0, %s292
    %s316 = sphi 0, %s318
    %s319 = sphi 0, %s316
    %s320 = sphi 0, %s319
    %s336 = sphi 0, %s320
  $region4: #{cross_loss_pallas.1} parent=0 // loop_header_branch
    %18 = sbr.rel (%p16) target = $region8
  $region5: #{cross_loss_pallas.1} parent=0 // loop_body
    %s20 = ssub.s32 %s15, 1
    %s21 = ssub.s32 %s15, 2
    %s31 = sadd.s32 1, %s24
    %p32 = scmp.ge.s32.totalorder %s31, 1
    %s33 = scalar_select %p32, 0, %s31
    %s34 = sadd.s32 1, %s23
    %s35 = scalar_select %p32, %s34, %s23
    %p36 = scmp.ge.s32.totalorder %s35, 1
    %s37 = scalar_select %p36, 0, %s35
    %s38 = sadd.s32 1, %s22
    %s39 = scalar_select %p36, %s38, %s22
    %p40 = scmp.ge.s32.totalorder %s39, 2
    %s41 = scalar_select %p40, 0, %s39
    %s42 = sadd.s32 %s23, %s24
    %s43 = sadd.s32 %s37, %s33
    %s44 = ssub.s32 %s22, %s41
    %s45 = ssub.s32 %s42, %s43
    %s46 = sor.u32 %s44, %s45
    %p47 = scmp.eq.s32.totalorder %s46, 0
    %s49 = sadd.s32 %s48, 1
    %s50 = scalar_select %p47, %s48, %s49
    %p53 = pneg %p47
    %p54 = scmp.eq.s32.totalorder %s15, 1
    %p55 = por %p53, %p54
    %p56 = scmp.ne.s32.totalorder %s48, %s51
    %p57 = scmp.eq.s32.totalorder %s15, 0
    %p58 = por %p56, %p57
    %p59 = scmp.ne.s32.totalorder %s48, %s51
    %p60 = scmp.eq.s32.totalorder %s20, 1
    %p61 = por %p59, %p60
    %p62 = scmp.ne.s32.totalorder %s51, %s52
    %p63 = scmp.eq.s32.totalorder %s20, 0
    %p64 = por %p62, %p63
    %p65 = scmp.ne.s32.totalorder %s51, %s52
    %p66 = scmp.eq.s32.totalorder %s21, 1
    %p67 = por %p65, %p66
    %p69 = scmp.ne.s32.totalorder %s52, %s68
    %p70 = scmp.eq.s32.totalorder %s21, 0
    %p71 = por %p69, %p70
    %s72 = sadd.s32 %s23, %s24
    %s73 = sadd.s32 %s37, %s33
    %s74 = ssub.s32 %s22, %s41
    %s75 = ssub.s32 %s72, %s73
    %s76 = sor.u32 %s74, %s75
    %p77 = scmp.eq.s32.totalorder %s76, 0
    %s79 = sadd.s32 %s78, 1
    %s80 = scalar_select %p77, %s78, %s79
    %p83 = pneg %p77
    %p84 = scmp.eq.s32.totalorder %s15, 1
    %p85 = por %p83, %p84
    %p86 = scmp.ne.s32.totalorder %s78, %s81
    %p87 = scmp.eq.s32.totalorder %s15, 0
    %p88 = por %p86, %p87
    %p89 = scmp.ne.s32.totalorder %s78, %s81
    %p90 = scmp.eq.s32.totalorder %s20, 1
    %p91 = por %p89, %p90
    %p92 = scmp.ne.s32.totalorder %s81, %s82
    %p93 = scmp.eq.s32.totalorder %s20, 0
    %p94 = por %p92, %p93
    %p95 = scmp.ne.s32.totalorder %s81, %s82
    %p96 = scmp.eq.s32.totalorder %s21, 1
    %p97 = por %p95, %p96
    %p99 = scmp.ne.s32.totalorder %s82, %s98
    %p100 = scmp.eq.s32.totalorder %s21, 0
    %p101 = por %p99, %p100
    %s102 = sadd.s32 %s23, %s24
    %s103 = sadd.s32 %s37, %s33
    %s104 = ssub.s32 %s22, %s41
    %s105 = ssub.s32 %s102, %s103
    %s106 = sor.u32 %s104, %s105
    %p107 = scmp.eq.s32.totalorder %s106, 0
    %s109 = sadd.s32 %s108, 1
    %s110 = scalar_select %p107, %s108, %s109
    %p113 = pneg %p107
    %p114 = scmp.eq.s32.totalorder %s15, 1
    %p115 = por %p113, %p114
    %p116 = scmp.ne.s32.totalorder %s108, %s111
    %p117 = scmp.eq.s32.totalorder %s15, 0
    %p118 = por %p116, %p117
    %p119 = scmp.ne.s32.totalorder %s108, %s111
    %p120 = scmp.eq.s32.totalorder %s20, 1
    %p121 = por %p119, %p120
    %p122 = scmp.ne.s32.totalorder %s111, %s112
    %p123 = scmp.eq.s32.totalorder %s20, 0
    %p124 = por %p122, %p123
    %p125 = scmp.ne.s32.totalorder %s111, %s112
    %p126 = scmp.eq.s32.totalorder %s21, 1
    %p127 = por %p125, %p126
    %p129 = scmp.ne.s32.totalorder %s112, %s128
    %p130 = scmp.eq.s32.totalorder %s21, 0
    %p131 = por %p129, %p130
    %s132 = sadd.s32 %s23, %s24
    %s133 = sadd.s32 %s37, %s33
    %s134 = ssub.s32 %s22, %s41
    %s135 = ssub.s32 %s132, %s133
    %s136 = sor.u32 %s134, %s135
    %p137 = scmp.eq.s32.totalorder %s136, 0
    %s139 = sadd.s32 %s138, 1
    %s140 = scalar_select %p137, %s138, %s139
    %p143 = pneg %p137
    %p144 = scmp.eq.s32.totalorder %s15, 1
    %p145 = por %p143, %p144
    %p146 = scmp.ne.s32.totalorder %s138, %s141
    %p147 = scmp.eq.s32.totalorder %s15, 0
    %p148 = por %p146, %p147
    %p149 = scmp.ne.s32.totalorder %s138, %s141
    %p150 = scmp.eq.s32.totalorder %s20, 1
    %p151 = por %p149, %p150
    %p152 = scmp.ne.s32.totalorder %s141, %s142
    %p153 = scmp.eq.s32.totalorder %s20, 0
    %p154 = por %p152, %p153
    %p155 = scmp.ne.s32.totalorder %s141, %s142
    %p156 = scmp.eq.s32.totalorder %s21, 1
    %p157 = por %p155, %p156
    %p159 = scmp.ne.s32.totalorder %s142, %s158
    %p160 = scmp.eq.s32.totalorder %s21, 0
    %p161 = por %p159, %p160
    %s162 = sadd.s32 %s23, %s24
    %s163 = sadd.s32 %s37, %s33
    %s164 = ssub.s32 %s22, %s41
    %s165 = ssub.s32 %s162, %s163
    %s166 = sor.u32 %s164, %s165
    %p167 = scmp.eq.s32.totalorder %s166, 0
    %s169 = sadd.s32 %s168, 1
    %s170 = scalar_select %p167, %s168, %s169
    %p173 = pneg %p167
    %p174 = scmp.eq.s32.totalorder %s15, 1
    %p175 = por %p173, %p174
    %p176 = scmp.ne.s32.totalorder %s168, %s171
    %p177 = scmp.eq.s32.totalorder %s15, 0
    %p178 = por %p176, %p177
    %p179 = scmp.ne.s32.totalorder %s168, %s171
    %p180 = scmp.eq.s32.totalorder %s20, 1
    %p181 = por %p179, %p180
    %p182 = scmp.ne.s32.totalorder %s171, %s172
    %p183 = scmp.eq.s32.totalorder %s20, 0
    %p184 = por %p182, %p183
    %p185 = scmp.ne.s32.totalorder %s171, %s172
    %p186 = scmp.eq.s32.totalorder %s21, 1
    %p187 = por %p185, %p186
    %p189 = scmp.ne.s32.totalorder %s172, %s188
    %p190 = scmp.eq.s32.totalorder %s21, 0
    %p191 = por %p189, %p190
    %s192 = sadd.s32 %s23, %s24
    %s193 = sadd.s32 %s37, %s33
    %s194 = ssub.s32 %s22, %s41
    %s195 = ssub.s32 %s192, %s193
    %s196 = sor.u32 %s194, %s195
    %p197 = scmp.eq.s32.totalorder %s196, 0
    %s199 = sadd.s32 %s198, 1
    %s200 = scalar_select %p197, %s198, %s199
    %p203 = pneg %p197
    %p204 = scmp.eq.s32.totalorder %s15, 1
    %p205 = por %p203, %p204
    %p206 = scmp.ne.s32.totalorder %s198, %s201
    %p207 = scmp.eq.s32.totalorder %s15, 0
    %p208 = por %p206, %p207
    %p209 = scmp.ne.s32.totalorder %s198, %s201
    %p210 = scmp.eq.s32.totalorder %s20, 1
    %p211 = por %p209, %p210
    %p212 = scmp.ne.s32.totalorder %s201, %s202
    %p213 = scmp.eq.s32.totalorder %s20, 0
    %p214 = por %p212, %p213
    %p215 = scmp.ne.s32.totalorder %s201, %s202
    %p216 = scmp.eq.s32.totalorder %s21, 1
    %p217 = por %p215, %p216
    %p219 = scmp.ne.s32.totalorder %s202, %s218
    %p220 = scmp.eq.s32.totalorder %s21, 0
    %p221 = por %p219, %p220
    %s222 = sadd.s32 %s23, %s24
    %s223 = sadd.s32 %s37, %s33
    %s224 = ssub.s32 %s22, %s41
    %s225 = ssub.s32 %s222, %s223
    %s226 = sor.u32 %s224, %s225
    %p227 = scmp.eq.s32.totalorder %s226, 0
    %s229 = sadd.s32 %s228, 1
    %s230 = scalar_select %p227, %s228, %s229
    %p233 = pneg %p227
    %p234 = scmp.eq.s32.totalorder %s15, 1
    %p235 = por %p233, %p234
    %p236 = scmp.ne.s32.totalorder %s228, %s231
    %p237 = scmp.eq.s32.totalorder %s15, 0
    %p238 = por %p236, %p237
    %p239 = scmp.ne.s32.totalorder %s228, %s231
    %p240 = scmp.eq.s32.totalorder %s20, 1
    %p241 = por %p239, %p240
    %p242 = scmp.ne.s32.totalorder %s231, %s232
    %p243 = scmp.eq.s32.totalorder %s20, 0
    %p244 = por %p242, %p243
    %p245 = scmp.ne.s32.totalorder %s231, %s232
    %p246 = scmp.eq.s32.totalorder %s21, 1
    %p247 = por %p245, %p246
    %p249 = scmp.ne.s32.totalorder %s232, %s248
    %p250 = scmp.eq.s32.totalorder %s21, 0
    %p251 = por %p249, %p250
    %s252 = sadd.s32 %s23, %s24
    %s253 = sadd.s32 %s37, %s33
    %s254 = ssub.s32 %s22, %s41
    %s255 = ssub.s32 %s252, %s253
    %s256 = sor.u32 %s254, %s255
    %p257 = scmp.eq.s32.totalorder %s256, 0
    %s259 = sadd.s32 %s258, 1
    %s260 = scalar_select %p257, %s258, %s259
    %p263 = pneg %p257
    %p264 = scmp.eq.s32.totalorder %s15, 1
    %p265 = por %p263, %p264
    %p266 = scmp.ne.s32.totalorder %s258, %s261
    %p267 = scmp.eq.s32.totalorder %s15, 0
    %p268 = por %p266, %p267
    %p269 = scmp.ne.s32.totalorder %s258, %s261
    %p270 = scmp.eq.s32.totalorder %s20, 1
    %p271 = por %p269, %p270
    %p272 = scmp.ne.s32.totalorder %s261, %s262
    %p273 = scmp.eq.s32.totalorder %s20, 0
    %p274 = por %p272, %p273
    %p275 = scmp.ne.s32.totalorder %s261, %s262
    %p276 = scmp.eq.s32.totalorder %s21, 1
    %p277 = por %p275, %p276
    %p279 = scmp.ne.s32.totalorder %s262, %s278
    %p280 = scmp.eq.s32.totalorder %s21, 0
    %p281 = por %p279, %p280
    %s282 = sadd.s32 %s23, %s24
    %s283 = sadd.s32 %s37, %s33
    %s284 = ssub.s32 %s22, %s41
    %s285 = ssub.s32 %s282, %s283
    %s286 = sor.u32 %s284, %s285
    %p287 = scmp.eq.s32.totalorder %s286, 0
    %s289 = sadd.s32 %s288, 1
    %s290 = scalar_select %p287, %s288, %s289
    %p293 = pneg %p287
    %p294 = scmp.eq.s32.totalorder %s15, 1
    %p295 = por %p293, %p294
    %p296 = scmp.ne.s32.totalorder %s288, %s291
    %p297 = scmp.eq.s32.totalorder %s15, 0
    %p298 = por %p296, %p297
    %p299 = scmp.ne.s32.totalorder %s288, %s291
    %p300 = scmp.eq.s32.totalorder %s20, 1
    %p301 = por %p299, %p300
    %p302 = scmp.ne.s32.totalorder %s291, %s292
    %p303 = scmp.eq.s32.totalorder %s20, 0
    %p304 = por %p302, %p303
    %p305 = scmp.ne.s32.totalorder %s291, %s292
    %p306 = scmp.eq.s32.totalorder %s21, 1
    %p307 = por %p305, %p306
    %p309 = scmp.ne.s32.totalorder %s292, %s308
    %p310 = scmp.eq.s32.totalorder %s21, 0
    %p311 = por %p309, %p310
    %s312 = ssub.s32 %s22, %s41
    %s313 = ssub.s32 %s23, %s37
    %s314 = sor.u32 %s312, %s313
    %p315 = scmp.eq.s32.totalorder %s314, 0
    %s317 = sadd.s32 %s316, 1
    %s318 = scalar_select %p315, %s316, %s317
    %p321 = pneg %p315
    %p322 = scmp.eq.s32.totalorder %s15, 1
    %p323 = por %p321, %p322
    %p324 = scmp.ne.s32.totalorder %s316, %s319
    %p325 = scmp.eq.s32.totalorder %s15, 0
    %p326 = por %p324, %p325
    %p327 = scmp.ne.s32.totalorder %s316, %s319
    %p328 = scmp.eq.s32.totalorder %s20, 1
    %p329 = por %p327, %p328
    %p330 = scmp.ne.s32.totalorder %s319, %s320
    %p331 = scmp.eq.s32.totalorder %s20, 0
    %p332 = por %p330, %p331
    %p333 = scmp.ne.s32.totalorder %s319, %s320
    %p334 = scmp.eq.s32.totalorder %s21, 1
    %p335 = por %p333, %p334
    %p337 = scmp.ne.s32.totalorder %s320, %s336
    %p338 = scmp.eq.s32.totalorder %s21, 0
    %p339 = por %p337, %p338
    %p340 = scmp.le.s32.totalorder 1, %s15
    %p341 = scmp.lt.s32.totalorder %s15, 3
    %p342 = pnand %p340, %p341
    %p343 = pneg %p342
    // Predicated region
    $region9: #{cross_loss_pallas.1} parent=5 // pred_check
      _
    $region10: #{cross_loss_pallas.1} parent=5 // pred_check_branch
      %345 = sbr.rel (%p342) target = $region12
    $region11: #{cross_loss_pallas.1} parent=5 // pred_region
      %s346 = ssub.s32 %s15, 1
    $region12: #{cross_loss_pallas.1} parent=5 // pred_fallthru
      _
    %p347 = scmp.lt.s32.totalorder %s15, 2
    // Predicated region
    $region13: #{cross_loss_pallas.1} parent=5 // pred_check
      %p348 = pneg %p347
    $region14: #{cross_loss_pallas.1} parent=5 // pred_check_branch
      %350 = sbr.rel (%p348) target = $region16
    $region15: #{cross_loss_pallas.1} parent=5 // pred_region
      // Predicated region
      $region17: #{cross_loss_pallas.1} parent=15 // pred_check
        %p351 = pneg %p58
      $region18: #{cross_loss_pallas.1} parent=15 // pred_check_branch
        %353 = sbr.rel (%p351) target = $region20
      $region19: #{cross_loss_pallas.1} parent=15 // pred_region
        %s354 = sadd.s32 %s23, %s24
        %p355 = scmp.lt.s32.totalorder %s22, 1
        %s356 = scalar_select %p355, %s22, 1
        %p357 = scmp.lt.s32.totalorder %s354, 0
        %s358 = scalar_select %p357, %s354, 0
        %s359 = sadd.s32 %s358, %s356
        %s360 = smul.addr %s359, 8
        %s361 = scalar_lea.vmem %s0, %s360
        %s362 = sadd.s32 %s23, %s24
      $region20: #{cross_loss_pallas.1} parent=15 // pred_fallthru
        _
      // Predicated region
      $region21: #{cross_loss_pallas.1} parent=15 // pred_check
        %p363 = pneg %p88
      $region22: #{cross_loss_pallas.1} parent=15 // pred_check_branch
        %365 = sbr.rel (%p363) target = $region24
      $region23: #{cross_loss_pallas.1} parent=15 // pred_region
        %s366 = sadd.s32 %s23, %s24
        %p367 = scmp.lt.s32.totalorder %s22, 1
        %s368 = scalar_select %p367, %s22, 1
        %p369 = scmp.lt.s32.totalorder %s366, 0
        %s370 = scalar_select %p369, %s366, 0
        %s371 = sadd.s32 %s370, %s368
        %s372 = smul.addr %s371, 8
        %s373 = scalar_lea.vmem %s1, %s372
        %s374 = sadd.s32 %s23, %s24
      $region24: #{cross_loss_pallas.1} parent=15 // pred_fallthru
        _
      // Predicated region
      $region25: #{cross_loss_pallas.1} parent=15 // pred_check
        %p375 = pneg %p118
      $region26: #{cross_loss_pallas.1} parent=15 // pred_check_branch
        %377 = sbr.rel (%p375) target = $region28
      $region27: #{cross_loss_pallas.1} parent=15 // pred_region
        %s378 = sadd.s32 %s23, %s24
        %p379 = scmp.lt.s32.totalorder %s22, 1
        %s380 = scalar_select %p379, %s22, 1
        %p381 = scmp.lt.s32.totalorder %s378, 0
        %s382 = scalar_select %p381, %s378, 0
        %s383 = sadd.s32 %s382, %s380
        %s384 = smul.addr %s383, 2
        %s385 = scalar_lea.vmem %s2, %s384
        %s386 = sadd.s32 %s23, %s24
      $region28: #{cross_loss_pallas.1} parent=15 // pred_fallthru
        _
      // Predicated region
      $region29: #{cross_loss_pallas.1} parent=15 // pred_check
        %p387 = pneg %p148
      $region30: #{cross_loss_pallas.1} parent=15 // pred_check_branch
        %389 = sbr.rel (%p387) target = $region32
      $region31: #{cross_loss_pallas.1} parent=15 // pred_region
        %s390 = sadd.s32 %s23, %s24
        %p391 = scmp.lt.s32.totalorder %s22, 1
        %s392 = scalar_select %p391, %s22, 1
        %p393 = scmp.lt.s32.totalorder %s390, 0
        %s394 = scalar_select %p393, %s390, 0
        %s395 = sadd.s32 %s394, %s392
        %s396 = smul.addr %s395, 8
        %s397 = scalar_lea.vmem %s3, %s396
        %s398 = sadd.s32 %s23, %s24
      $region32: #{cross_loss_pallas.1} parent=15 // pred_fallthru
        _
      // Predicated region
      $region33: #{cross_loss_pallas.1} parent=15 // pred_check
        %p399 = pneg %p178
      $region34: #{cross_loss_pallas.1} parent=15 // pred_check_branch
        %401 = sbr.rel (%p399) target = $region36
      $region35: #{cross_loss_pallas.1} parent=15 // pred_region
        %s402 = sadd.s32 %s23, %s24
        %p403 = scmp.lt.s32.totalorder %s22, 1
        %s404 = scalar_select %p403, %s22, 1
        %p405 = scmp.lt.s32.totalorder %s402, 0
        %s406 = scalar_select %p405, %s402, 0
        %s407 = sadd.s32 %s406, %s404
        %s408 = smul.addr %s407, 8
        %s409 = scalar_lea.vmem %s4, %s408
        %s410 = sadd.s32 %s23, %s24
      $region36: #{cross_loss_pallas.1} parent=15 // pred_fallthru
        _
      // Predicated region
      $region37: #{cross_loss_pallas.1} parent=15 // pred_check
        %p411 = pneg %p208
      $region38: #{cross_loss_pallas.1} parent=15 // pred_check_branch
        %413 = sbr.rel (%p411) target = $region40
      $region39: #{cross_loss_pallas.1} parent=15 // pred_region
        %s414 = sadd.s32 %s23, %s24
        %p415 = scmp.lt.s32.totalorder %s22, 1
        %s416 = scalar_select %p415, %s22, 1
        %p417 = scmp.lt.s32.totalorder %s414, 0
        %s418 = scalar_select %p417, %s414, 0
        %s419 = sadd.s32 %s418, %s416
        %s420 = smul.addr %s419, 2
        %s421 = scalar_lea.vmem %s5, %s420
        %s422 = sadd.s32 %s23, %s24
      $region40: #{cross_loss_pallas.1} parent=15 // pred_fallthru
        _
      // Predicated region
      $region41: #{cross_loss_pallas.1} parent=15 // pred_check
        %p423 = pneg %p238
      $region42: #{cross_loss_pallas.1} parent=15 // pred_check_branch
        %425 = sbr.rel (%p423) target = $region44
      $region43: #{cross_loss_pallas.1} parent=15 // pred_region
        %s426 = sadd.s32 %s23, %s24
        %p427 = scmp.lt.s32.totalorder %s22, 1
        %s428 = scalar_select %p427, %s22, 1
        %p429 = scmp.lt.s32.totalorder %s426, 0
        %s430 = scalar_select %p429, %s426, 0
        %s431 = sadd.s32 %s430, %s428
        %s432 = smul.addr %s431, 8
        %s433 = scalar_lea.vmem %s6, %s432
        %s434 = sadd.s32 %s23, %s24
      $region44: #{cross_loss_pallas.1} parent=15 // pred_fallthru
        _
      // Predicated region
      $region45: #{cross_loss_pallas.1} parent=15 // pred_check
        %p435 = pneg %p268
      $region46: #{cross_loss_pallas.1} parent=15 // pred_check_branch
        %437 = sbr.rel (%p435) target = $region48
      $region47: #{cross_loss_pallas.1} parent=15 // pred_region
        %s438 = sadd.s32 %s23, %s24
        %p439 = scmp.lt.s32.totalorder %s22, 1
        %s440 = scalar_select %p439, %s22, 1
        %p441 = scmp.lt.s32.totalorder %s438, 0
        %s442 = scalar_select %p441, %s438, 0
        %s443 = sadd.s32 %s442, %s440
        %s444 = smul.addr %s443, 8
        %s445 = scalar_lea.vmem %s7, %s444
        %s446 = sadd.s32 %s23, %s24
      $region48: #{cross_loss_pallas.1} parent=15 // pred_fallthru
        _
      // Predicated region
      $region49: #{cross_loss_pallas.1} parent=15 // pred_check
        %p447 = pneg %p298
      $region50: #{cross_loss_pallas.1} parent=15 // pred_check_branch
        %449 = sbr.rel (%p447) target = $region52
      $region51: #{cross_loss_pallas.1} parent=15 // pred_region
        %s450 = sadd.s32 %s23, %s24
        %p451 = scmp.lt.s32.totalorder %s22, 1
        %s452 = scalar_select %p451, %s22, 1
        %p453 = scmp.lt.s32.totalorder %s450, 0
        %s454 = scalar_select %p453, %s450, 0
        %s455 = sadd.s32 %s454, %s452
        %s456 = smul.addr %s455, 2
        %s457 = scalar_lea.vmem %s8, %s456
        %s458 = sadd.s32 %s23, %s24
      $region52: #{cross_loss_pallas.1} parent=15 // pred_fallthru
        _
    $region16: #{cross_loss_pallas.1} parent=5 // pred_fallthru
      _
    %p459 = scmp.le.s32.totalorder 1, %s15
    %p460 = scmp.lt.s32.totalorder %s15, 3
    %p461 = pnand %p459, %p460
    %p462 = pneg %p461
    // Predicated region
    $region53: #{cross_loss_pallas.1} parent=5 // pred_check
      _
    $region54: #{cross_loss_pallas.1} parent=5 // pred_check_branch
      %464 = sbr.rel (%p461) target = $region56
    $region55: #{cross_loss_pallas.1} parent=5 // pred_region
      %s465 = ssub.s32 %s15, 1
      %s466 = sadd.s32 %s26, %s27
      %p467 = scmp.lt.s32.totalorder %s25, 1
      %s468 = scalar_select %p467, %s25, 1
      %p469 = scmp.lt.s32.totalorder %s466, 0
      %s470 = scalar_select %p469, %s466, 0
      %s471 = sadd.s32 %s470, %s468
      %s472 = smul.addr %s471, 8
      %s473 = scalar_lea.vmem %s0, %s472
      %p474 = pneg %p64
      %p475 = pneg %p61
      %s476 = sadd.s32 %s26, %s27
      %p477 = scmp.lt.s32.totalorder %s25, 1
      %s478 = scalar_select %p477, %s25, 1
      %p479 = scmp.lt.s32.totalorder %s476, 0
      %s480 = scalar_select %p479, %s476, 0
      %s481 = sadd.s32 %s480, %s478
      %s482 = smul.addr %s481, 8
      %s483 = scalar_lea.vmem %s1, %s482
      %p484 = pneg %p94
      %p485 = pneg %p91
      %s486 = sadd.s32 %s26, %s27
      %p487 = scmp.lt.s32.totalorder %s25, 1
      %s488 = scalar_select %p487, %s25, 1
      %p489 = scmp.lt.s32.totalorder %s486, 0
      %s490 = scalar_select %p489, %s486, 0
      %s491 = sadd.s32 %s490, %s488
      %s492 = smul.addr %s491, 2
      %s493 = scalar_lea.vmem %s2, %s492
      %p494 = pneg %p124
      %p495 = pneg %p121
      %s496 = sadd.s32 %s26, %s27
      %p497 = scmp.lt.s32.totalorder %s25, 1
      %s498 = scalar_select %p497, %s25, 1
      %p499 = scmp.lt.s32.totalorder %s496, 0
      %s500 = scalar_select %p499, %s496, 0
      %s501 = sadd.s32 %s500, %s498
      %s502 = smul.addr %s501, 8
      %s503 = scalar_lea.vmem %s3, %s502
      %p504 = pneg %p154
      %p505 = pneg %p151
      %s506 = sadd.s32 %s26, %s27
      %p507 = scmp.lt.s32.totalorder %s25, 1
      %s508 = scalar_select %p507, %s25, 1
      %p509 = scmp.lt.s32.totalorder %s506, 0
      %s510 = scalar_select %p509, %s506, 0
      %s511 = sadd.s32 %s510, %s508
      %s512 = smul.addr %s511, 8
      %s513 = scalar_lea.vmem %s4, %s512
      %p514 = pneg %p184
      %p515 = pneg %p181
      %s516 = sadd.s32 %s26, %s27
      %p517 = scmp.lt.s32.totalorder %s25, 1
      %s518 = scalar_select %p517, %s25, 1
      %p519 = scmp.lt.s32.totalorder %s516, 0
      %s520 = scalar_select %p519, %s516, 0
      %s521 = sadd.s32 %s520, %s518
      %s522 = smul.addr %s521, 2
      %s523 = scalar_lea.vmem %s5, %s522
      %p524 = pneg %p214
      %p525 = pneg %p211
      %s526 = sadd.s32 %s26, %s27
      %p527 = scmp.lt.s32.totalorder %s25, 1
      %s528 = scalar_select %p527, %s25, 1
      %p529 = scmp.lt.s32.totalorder %s526, 0
      %s530 = scalar_select %p529, %s526, 0
      %s531 = sadd.s32 %s530, %s528
      %s532 = smul.addr %s531, 8
      %s533 = scalar_lea.vmem %s6, %s532
      %p534 = pneg %p244
      %p535 = pneg %p241
      %s536 = sadd.s32 %s26, %s27
      %p537 = scmp.lt.s32.totalorder %s25, 1
      %s538 = scalar_select %p537, %s25, 1
      %p539 = scmp.lt.s32.totalorder %s536, 0
      %s540 = scalar_select %p539, %s536, 0
      %s541 = sadd.s32 %s540, %s538
      %s542 = smul.addr %s541, 8
      %s543 = scalar_lea.vmem %s7, %s542
      %p544 = pneg %p274
      %p545 = pneg %p271
      %s546 = sadd.s32 %s26, %s27
      %p547 = scmp.lt.s32.totalorder %s25, 1
      %s548 = scalar_select %p547, %s25, 1
      %p549 = scmp.lt.s32.totalorder %s546, 0
      %s550 = scalar_select %p549, %s546, 0
      %s551 = sadd.s32 %s550, %s548
      %s552 = smul.addr %s551, 2
      %s553 = scalar_lea.vmem %s8, %s552
      %p554 = pneg %p304
      %p555 = pneg %p301
      %p556 = pneg %p332
      %p557 = pneg %p329
      %p558 = scmp.lt.s32.totalorder %s25, 1
      %s559 = scalar_select %p558, %s25, 1
      %p560 = scmp.lt.s32.totalorder %s26, 0
      %s561 = scalar_select %p560, %s26, 0
      %s562 = sadd.s32 %s561, %s559
      %s563 = scalar_lea.vmem %s9, %s562
      %s564 = sadd.s32 %s26, %s27
      %p565 = scmp.lt.s32.totalorder %s25, 1
      %s566 = scalar_select %p565, %s25, 1
      %p567 = scmp.lt.s32.totalorder %s564, 0
      %s568 = scalar_select %p567, %s564, 0
      %s569 = sadd.s32 %s568, %s566
      %s570 = smul.addr %s569, 8
      %s571 = scalar_lea.vmem %s0, %s570
      %s572 = sadd.s32 %s26, %s27
      %s573 = sadd.s32 %s26, %s27
      %p574 = scmp.lt.s32.totalorder %s25, 1
      %s575 = scalar_select %p574, %s25, 1
      %p576 = scmp.lt.s32.totalorder %s573, 0
      %s577 = scalar_select %p576, %s573, 0
      %s578 = sadd.s32 %s577, %s575
      %s579 = smul.addr %s578, 8
      %s580 = scalar_lea.vmem %s1, %s579
      %s581 = sadd.s32 %s26, %s27
      %s582 = sadd.s32 %s26, %s27
      %p583 = scmp.lt.s32.totalorder %s25, 1
      %s584 = scalar_select %p583, %s25, 1
      %p585 = scmp.lt.s32.totalorder %s582, 0
      %s586 = scalar_select %p585, %s582, 0
      %s587 = sadd.s32 %s586, %s584
      %s588 = smul.addr %s587, 2
      %s589 = scalar_lea.vmem %s2, %s588
      %s590 = sadd.s32 %s26, %s27
      %s591 = sadd.s32 %s26, %s27
      %p592 = scmp.lt.s32.totalorder %s25, 1
      %s593 = scalar_select %p592, %s25, 1
      %p594 = scmp.lt.s32.totalorder %s591, 0
      %s595 = scalar_select %p594, %s591, 0
      %s596 = sadd.s32 %s595, %s593
      %s597 = smul.addr %s596, 8
      %s598 = scalar_lea.vmem %s3, %s597
      %s599 = sadd.s32 %s26, %s27
      %s600 = sadd.s32 %s26, %s27
      %p601 = scmp.lt.s32.totalorder %s25, 1
      %s602 = scalar_select %p601, %s25, 1
      %p603 = scmp.lt.s32.totalorder %s600, 0
      %s604 = scalar_select %p603, %s600, 0
      %s605 = sadd.s32 %s604, %s602
      %s606 = smul.addr %s605, 8
      %s607 = scalar_lea.vmem %s4, %s606
      %s608 = sadd.s32 %s26, %s27
      %s609 = sadd.s32 %s26, %s27
      %p610 = scmp.lt.s32.totalorder %s25, 1
      %s611 = scalar_select %p610, %s25, 1
      %p612 = scmp.lt.s32.totalorder %s609, 0
      %s613 = scalar_select %p612, %s609, 0
      %s614 = sadd.s32 %s613, %s611
      %s615 = smul.addr %s614, 2
      %s616 = scalar_lea.vmem %s5, %s615
      %s617 = sadd.s32 %s26, %s27
      %s618 = sadd.s32 %s26, %s27
      %p619 = scmp.lt.s32.totalorder %s25, 1
      %s620 = scalar_select %p619, %s25, 1
      %p621 = scmp.lt.s32.totalorder %s618, 0
      %s622 = scalar_select %p621, %s618, 0
      %s623 = sadd.s32 %s622, %s620
      %s624 = smul.addr %s623, 8
      %s625 = scalar_lea.vmem %s6, %s624
      %s626 = sadd.s32 %s26, %s27
      %s627 = sadd.s32 %s26, %s27
      %p628 = scmp.lt.s32.totalorder %s25, 1
      %s629 = scalar_select %p628, %s25, 1
      %p630 = scmp.lt.s32.totalorder %s627, 0
      %s631 = scalar_select %p630, %s627, 0
      %s632 = sadd.s32 %s631, %s629
      %s633 = smul.addr %s632, 8
      %s634 = scalar_lea.vmem %s7, %s633
      %s635 = sadd.s32 %s26, %s27
      %s636 = sadd.s32 %s26, %s27
      %p637 = scmp.lt.s32.totalorder %s25, 1
      %s638 = scalar_select %p637, %s25, 1
      %p639 = scmp.lt.s32.totalorder %s636, 0
      %s640 = scalar_select %p639, %s636, 0
      %s641 = sadd.s32 %s640, %s638
      %s642 = smul.addr %s641, 2
      %s643 = scalar_lea.vmem %s8, %s642
      %s644 = sadd.s32 %s26, %s27
      %p645 = scmp.lt.s32.totalorder %s25, 1
      %s646 = scalar_select %p645, %s25, 1
      %p647 = scmp.lt.s32.totalorder %s26, 0
      %s648 = scalar_select %p647, %s26, 0
      %s649 = sadd.s32 %s648, %s646
      %s650 = scalar_lea.vmem %s9, %s649
      %p651 = scmp.eq.s32.totalorder %s27, 0
      // Predicated region
      $region57: #{cross_loss_pallas.1} parent=55 // pred_check
        %p652 = pneg %p651
      $region58: #{cross_loss_pallas.1} parent=55 // pred_check_branch
        %654 = sbr.rel (%p652) target = $region60
      $region59: #{cross_loss_pallas.1} parent=55 // pred_region
        %655 = vst [vmem:[#allocation2] sm:$0xff] 0.0
      $region60: #{cross_loss_pallas.1} parent=55 // pred_fallthru
        _
      %v656 = vld [vmem:[%s571] sm:$0xff]
      %v657 = vld [vmem:[%s580] sm:$0xff]
      %v658 = vld [vmem:[%s589] sm:$0x3]
      %v660 = vrot.slane %v658, 6
      %v662 = vrot.slane %v658, 4
      %v664 = vrot.slane %v658, 2
      %vm666 = vcmask 1041408
      %v667 = vsel %vm666, %v658, %v660
      %vm668 = vcmask 1043456
      %v669 = vsel %vm668, %v667, %v662
      %vm670 = vcmask 1045504
      %v671 = vsel %vm670, %v669, %v664
      %v672 = vadd.f32 %v656, 1e-08
      %v673 = vlog2.pop %v672
      %v674 = vmul.f32 %v673, 0.6931472
      %v675 = vmul.f32 %v657, %v674
      %v676 = vmul.f32 %v675, %v671
      %v677 = vld [vmem:[%s598] sm:$0xff]
      %v678 = vld [vmem:[%s607] sm:$0xff]
      %v679 = vld [vmem:[%s616] sm:$0x3]
      %v681 = vrot.slane %v679, 6
      %v683 = vrot.slane %v679, 4
      %v685 = vrot.slane %v679, 2
      %v687 = vsel %vm666, %v679, %v681
      %v688 = vsel %vm668, %v687, %v683
      %v689 = vsel %vm670, %v688, %v685
      %v690 = vadd.f32 %v677, 1e-08
      %v691 = vlog2.pop %v690
      %v692 = vmul.f32 %v691, 0.6931472
      %v693 = vmul.f32 %v678, %v692
      %v694 = vmul.f32 %v693, %v689
      %v695 = vadd.f32 %v676, %v694
      %v696 = vld [vmem:[%s625] sm:$0xff]
      %v697 = vld [vmem:[%s634] sm:$0xff]
      %v698 = vld [vmem:[%s643] sm:$0x3]
      %v700 = vrot.slane %v698, 6
      %v702 = vrot.slane %v698, 4
      %v704 = vrot.slane %v698, 2
      %v706 = vsel %vm666, %v698, %v700
      %v707 = vsel %vm668, %v706, %v702
      %v708 = vsel %vm670, %v707, %v704
      %v709 = vadd.f32 %v696, 1e-08
      %v710 = vlog2.pop %v709
      %v711 = vmul.f32 %v710, 0.6931472
      %v712 = vmul.f32 %v697, %v711
      %v713 = vmul.f32 %v712, %v708
      %v714 = vadd.f32 %v695, %v713
      %v715 = vld [vmem:[#allocation2] sm:$0xff]
      %v716 = vadd.f32 %v715, %v714
      %717 = vst [vmem:[#allocation2] sm:$0xff] %v716
      // Predicated region
      $region61: #{cross_loss_pallas.1} parent=55 // pred_check
        %p718 = pneg %p651
      $region62: #{cross_loss_pallas.1} parent=55 // pred_check_branch
        %720 = sbr.rel (%p718) target = $region64
      $region63: #{cross_loss_pallas.1} parent=55 // pred_region
        %v721 = vld [vmem:[#allocation2] sm:$0xff]
        %v722 = vrot.slane %v721, 4
        %v723 = vadd.f32 %v721, %v722
        %v724 = vrot.slane %v723, 2
        %v725 = vadd.f32 %v723, %v724
        %v726 = vrot.slane %v725, 1
        %v727 = vadd.f32 %v725, %v726
        %728 = vadd.xlane.f32.xlu0 %v727
        %v729 = vpop.xlane.xlu0 %728
        %730 = vst [vmem:[%s650] sm:$0x1] %v729
      $region64: #{cross_loss_pallas.1} parent=55 // pred_fallthru
        _
      %p731 = scmp.lt.s32.totalorder %s25, 1
      %s732 = scalar_select %p731, %s25, 1
      %p733 = scmp.lt.s32.totalorder %s26, 0
      %s734 = scalar_select %p733, %s26, 0
      %s735 = sadd.s32 %s734, %s732
      %s736 = scalar_lea.vmem %s9, %s735
      // Predicated region
      $region65: #{cross_loss_pallas.1} parent=55 // pred_check
        %p737 = pneg %p329
      $region66: #{cross_loss_pallas.1} parent=55 // pred_check_branch
        %739 = sbr.rel (%p737) target = $region68
      $region67: #{cross_loss_pallas.1} parent=55 // pred_region
        _
      $region68: #{cross_loss_pallas.1} parent=55 // pred_fallthru
        _
    $region56: #{cross_loss_pallas.1} parent=5 // pred_fallthru
      _
    %p740 = scmp.le.s32.totalorder 2, %s15
    // Predicated region
    $region69: #{cross_loss_pallas.1} parent=5 // pred_check
      %p741 = pneg %p740
    $region70: #{cross_loss_pallas.1} parent=5 // pred_check_branch
      %743 = sbr.rel (%p741) target = $region72
    $region71: #{cross_loss_pallas.1} parent=5 // pred_region
      %s744 = ssub.s32 %s15, 2
      // Predicated region
      $region73: #{cross_loss_pallas.1} parent=71 // pred_check
        %p745 = pneg %p335
      $region74: #{cross_loss_pallas.1} parent=71 // pred_check_branch
        %747 = sbr.rel (%p745) target = $region76
      $region75: #{cross_loss_pallas.1} parent=71 // pred_region
        %p748 = scmp.lt.s32.totalorder %s28, 1
        %s749 = scalar_select %p748, %s28, 1
        %p750 = scmp.lt.s32.totalorder %s29, 0
        %s751 = scalar_select %p750, %s29, 0
        %s752 = sadd.s32 %s751, %s749
        %s753 = scalar_lea.vmem %s9, %s752
      $region76: #{cross_loss_pallas.1} parent=71 // pred_fallthru
        _
    $region72: #{cross_loss_pallas.1} parent=5 // pred_fallthru
      _
  $region6: #{cross_loss_pallas.1} parent=0 // loop_footer
    %s19 = sadd.s32 1, %s15
  $region7: #{cross_loss_pallas.1} parent=0 // loop_footer_branch
    %14 = sbr.rel target = $region3
  $region8: #{cross_loss_pallas.1} parent=0 // loop_exit
    _

</llo_original>
